<compile_context>
chip_gen: v5e
topology: v5e:2x2
jax: 0.10.0
libtpu: 0.0.40
codegen_flags: <defaults>
</compile_context>

<pallas_src>
import numpy as np
import jax
import jax.numpy as jnp
from jax import lax
from jax.experimental import pallas as pl
from jax.experimental.pallas import tpu as pltpu


def _make_kernel(B, L_blk, V, H, NF, fs_max, label_num):
    N = B * L_blk

    def kernel(ids_ref, table_ref, wcol_ref, biasmask_ref, wfc_ref, bfc_ref,
               spks1_ref, spk2_ref, mem2_ref):
        # --- embedding lookup fused as a one-hot matmul (V is tiny) ---
        # TODO(synk): for a large vocabulary this would be a manual DMA gather
        # (scalar-prefetched ids + pl.ANY table), not a one-hot matmul.
        ids = ids_ref[...]                                       # (N, 1) int32
        vocab_iota = lax.broadcasted_iota(jnp.int32, (N, V), 1)
        onehot = (ids == vocab_iota).astype(jnp.float32)         # (N, V)
        emb = jnp.dot(onehot, table_ref[...],
                      preferred_element_type=jnp.float32)        # (N, H)

        # --- all batches / taps / filters in fs_max batched matmuls ---
        acc = jnp.zeros((N, NF), jnp.float32)
        for k in range(fs_max):
            # shifted[t] = emb[t + k]; wrapped rows only land on masked positions.
            shifted = emb if k == 0 else pltpu.roll(emb, shift=N - k, axis=0)
            acc = acc + jnp.dot(shifted, wcol_ref[k],
                                preferred_element_type=jnp.float32)

        # --- bias + (-inf) validity mask folded into one add, then max-pool ---
        masked = acc + biasmask_ref[...]                         # (N, NF)
        pooled = jnp.max(masked.reshape(B, L_blk, NF), axis=1)   # (B, NF)

        # lif1: fresh state -> mem = pooled, spike = heaviside(mem - 1.0)
        spks1 = (pooled > 1.0).astype(jnp.float32)
        spks1_ref[...] = spks1

        # fc_1 + lif2 (output=True -> (spk, mem))
        cur2 = jnp.dot(spks1, wfc_ref[...],
                       preferred_element_type=jnp.float32) + bfc_ref[...]
        mem2_ref[...] = cur2
        spk2_ref[...] = (cur2 > 1.0).astype(jnp.float32)

    return kernel


def textcnn_embeded_forward(x_ids, emb_table, conv_ws, conv_bs, wfc, bfc, filters):
    """Fused forward of TextCNNEmbeded (one time step, fresh SNN hidden state).

    x_ids:     (B, 1, L) int32 token ids (NCHW with C=1, as in the module)
    emb_table: (V, H) f32 embedding table for this step
    conv_ws:   conv_ws[i] in torch layout (F, 1, fs_i, H)
    conv_bs:   conv_bs[i] of shape (F,)
    wfc:       torch-layout fc weight (label_num, n_f*F)
    bfc:       fc bias (label_num,)
    """
    filters = tuple(int(f) for f in filters)
    B, _, L = x_ids.shape
    V, H = emb_table.shape
    F = conv_ws[0].shape[0]
    n_f = len(filters)
    NF = n_f * F
    label_num = wfc.shape[0]
    fs_max = max(filters)

    # One padded segment of L_blk rows per sentence; multiple of 8 keeps the
    # (B, L_blk, NF) pooling reshape sublane-tile aligned.
    L_blk = ((L + fs_max - 1 + 7) // 8) * 8
    N = B * L_blk

    # Token ids as a flat (N, 1) column; pad ids = 0 (pad rows only ever multiply
    # zero-padded filter taps or reach -inf-masked output positions).
    ids_seg = jnp.zeros((B, L_blk), jnp.int32)
    ids_seg = ids_seg.at[:, :L].set(x_ids[:, 0, :].astype(jnp.int32))
    ids_flat = ids_seg.reshape(N, 1)

    # Fuse the conv kernels into one zero-padded (fs_max, H, NF) tensor.
    wcol = np.zeros((fs_max, H, NF), np.float32)
    for i, fs in enumerate(filters):
        w = np.asarray(conv_ws[i], np.float32)                  # (F, 1, fs, H)
        wcol[:fs, :, i * F:(i + 1) * F] = np.transpose(w[:, 0], (1, 2, 0))
    wcol = jnp.asarray(wcol)

    # Conv bias + per-filter time-validity mask folded into one additive array.
    biasmask = np.full((N, NF), -1e30, np.float32)
    for i, fs in enumerate(filters):
        n_out = L - fs + 1
        b_i = np.asarray(conv_bs[i], np.float32).reshape(1, F)
        for b in range(B):
            biasmask[b * L_blk:b * L_blk + n_out, i * F:(i + 1) * F] = b_i
    biasmask = jnp.asarray(biasmask)

    wfc_t = jnp.asarray(wfc, jnp.float32).T                     # (NF, label_num)
    bfc_2d = jnp.asarray(bfc, jnp.float32).reshape(1, label_num)

    # Tiny working set (<1 MiB) -> single invocation, everything resident in VMEM.
    # TODO(synk): at large B, add a parallel grid over batch segments (each segment
    # is self-contained) so v7x's two TensorCores both get work.
    vmem = pl.BlockSpec(memory_space=pltpu.MemorySpace.VMEM)
    out_shape = (
        jax.ShapeDtypeStruct((B, NF), jnp.float32),             # spks_1
        jax.ShapeDtypeStruct((B, label_num), jnp.float32),      # spk2
        jax.ShapeDtypeStruct((B, label_num), jnp.float32),      # mem2
    )
    return pl.pallas_call(
        _make_kernel(B, L_blk, V, H, NF, fs_max, label_num),
        out_shape=out_shape,
        in_specs=[vmem] * 6,
        out_specs=(vmem, vmem, vmem),
    )(ids_flat, emb_table.astype(jnp.float32), wcol, biasmask, wfc_t, bfc_2d)


def _reference(x_ids, emb_table, conv_ws, conv_bs, wfc, bfc, filters):
    """Pure-JAX reference of the same forward pass (for validation)."""
    emb = jnp.take(emb_table, x_ids[:, 0, :], axis=0)           # (B, L, H)
    B, L, H = emb.shape
    spk_blocks = []
    for i, fs in enumerate(filters):
        w = jnp.transpose(jnp.asarray(conv_ws[i])[:, 0], (1, 2, 0))   # (fs, H, F)
        n_out = L - fs + 1
        acc = jnp.zeros((B, n_out, w.shape[-1]), jnp.float32)
        for k in range(fs):
            acc = acc + jnp.einsum('blh,hf->blf', emb[:, k:k + n_out, :], w[k])
        acc = acc + jnp.asarray(conv_bs[i])[None, None, :]
        pooled = jnp.max(acc, axis=1)
        spk_blocks.append((pooled > 1.0).astype(jnp.float32))
    spks1 = jnp.concatenate(spk_blocks, axis=1)
    cur2 = spks1 @ jnp.asarray(wfc).T + jnp.asarray(bfc)[None, :]
    return spks1, (cur2 > 1.0).astype(jnp.float32), cur2


if __name__ == "__main__":
    # "args" for the module (small, deterministic)
    num_embeddings = 50
    hidden_dim = 32          # args.hidden_dim
    sentence_length = 16     # args.sentence_length
    filters = (3, 4, 5)      # args.filters
    filter_num = 8           # args.filter_num
    label_num = 4            # args.label_num
    num_steps = 2            # args.num_steps
    B = 2

    key = jax.random.PRNGKey(0)
    k_emb, k_x, k_cw, k_cb, k_fw, k_fb = jax.random.split(key, 6)

    # one embedding table per time step, as in the module; we use num_step=0
    emb_tables = [
        jax.random.normal(jax.random.fold_in(k_emb, s),
                          (num_embeddings, hidden_dim), jnp.float32)
        for s in range(num_steps)
    ]

    # token ids, NCHW-style (B, 1, L) so Conv2d sees in_channels=1 after embedding
    x_ids = jax.random.randint(k_x, (B, 1, sentence_length), 0, num_embeddings)

    # conv weights in torch layout (F, 1, fs, H), biases (F,)
    conv_ws, conv_bs = [], []
    for i, fs in enumerate(filters):
        w = 0.3 * jax.random.normal(jax.random.fold_in(k_cw, i),
                                    (filter_num, 1, fs, hidden_dim), jnp.float32)
        b = 0.1 * jax.random.normal(jax.random.fold_in(k_cb, i),
                                    (filter_num,), jnp.float32)
        conv_ws.append(w)
        conv_bs.append(b)

    # fc_1 in torch layout (label_num, n_f*F), bias (label_num,)
    wfc = 0.5 * jax.random.normal(k_fw, (label_num, len(filters) * filter_num),
                                  jnp.float32)
    bfc = 0.1 * jax.random.normal(k_fb, (label_num,), jnp.float32)

    num_step = 0
    spks1, spk2, mem2 = textcnn_embeded_forward(
        x_ids, emb_tables[num_step], conv_ws, conv_bs, wfc, bfc, filters)
    jax.block_until_ready((spks1, spk2, mem2))

    # validate against pure-JAX reference
    r_spks1, r_spk2, r_mem2 = _reference(
        x_ids, emb_tables[num_step], conv_ws, conv_bs, wfc, bfc, filters)
    np.testing.assert_allclose(np.asarray(spks1), np.asarray(r_spks1), atol=1e-5)
    np.testing.assert_allclose(np.asarray(spk2), np.asarray(r_spk2), atol=1e-5)
    np.testing.assert_allclose(np.asarray(mem2), np.asarray(r_mem2),
                               rtol=1e-3, atol=1e-3)

    # TODO(synk): Monitor.add_monitor / dead_neuron_checker is a logging-only side
    # effect in the original module; not reproduced here.
    print("KERNEL_OK")
</pallas_src>

<mosaic_0001>
module attributes {stable_mosaic.version = 11 : i64} {
  func.func @kernel(%arg0: memref<48x1xi32, #tpu.memory_space<vmem>>, %arg1: memref<50x32xf32, #tpu.memory_space<vmem>>, %arg2: memref<5x32x24xf32, #tpu.memory_space<vmem>>, %arg3: memref<48x24xf32, #tpu.memory_space<vmem>>, %arg4: memref<24x4xf32, #tpu.memory_space<vmem>>, %arg5: memref<1x4xf32, #tpu.memory_space<vmem>>, %arg6: memref<2x24xf32, #tpu.memory_space<vmem>>, %arg7: memref<2x4xf32, #tpu.memory_space<vmem>>, %arg8: memref<2x4xf32, #tpu.memory_space<vmem>>) attributes {dimension_semantics = [], scalar_prefetch = 0 : i64, scratch_operands = 0 : i64, tpu.core_type = #tpu.core_type<tc>} {
    %c0 = arith.constant 0 : index
    %c0_0 = arith.constant 0 : index
    %0 = vector.load %arg0[%c0, %c0_0] : memref<48x1xi32, #tpu.memory_space<vmem>>, vector<48x1xi32>
    %1 = tpu.iota {dimensions = array<i32: 1>} : vector<48x50xi32>
    %2 = vector.broadcast %0 : vector<48x1xi32> to vector<48x50xi32>
    %3 = arith.cmpi eq, %2, %1 : vector<48x50xi32>
    %4 = arith.extui %3 : vector<48x50xi1> to vector<48x50xi32>
    %5 = arith.sitofp %4 : vector<48x50xi32> to vector<48x50xf32>
    %c0_1 = arith.constant 0 : index
    %c0_2 = arith.constant 0 : index
    %6 = vector.load %arg1[%c0_1, %c0_2] : memref<50x32xf32, #tpu.memory_space<vmem>>, vector<50x32xf32>
    %cst = arith.constant dense<0.000000e+00> : vector<48x32xf32>
    %7 = tpu.matmul %5, %6, %cst {dimension_numbers = #tpu.dot_dimension_numbers<[1], [0], [0], [1], [0, 0, 1, 1], [], []>} : vector<48x50xf32>, vector<50x32xf32>, vector<48x32xf32> -> vector<48x32xf32>
    %cst_3 = arith.constant 0.000000e+00 : f32
    %8 = vector.broadcast %cst_3 : f32 to vector<48x24xf32>
    %c0_4 = arith.constant 0 : index
    %c0_5 = arith.constant 0 : index
    %c0_6 = arith.constant 0 : index
    %9 = vector.load %arg2[%c0_4, %c0_5, %c0_6] : memref<5x32x24xf32, #tpu.memory_space<vmem>>, vector<1x32x24xf32>
    %10 = vector.shape_cast %9 : vector<1x32x24xf32> to vector<32x24xf32>
    %cst_7 = arith.constant dense<0.000000e+00> : vector<48x24xf32>
    %11 = tpu.matmul %7, %10, %cst_7 {dimension_numbers = #tpu.dot_dimension_numbers<[1], [0], [0], [1], [0, 0, 1, 1], [], []>} : vector<48x32xf32>, vector<32x24xf32>, vector<48x24xf32> -> vector<48x24xf32>
    %12 = arith.addf %8, %11 : vector<48x24xf32>
    %c47_i32 = arith.constant 47 : i32
    %13 = tpu.dynamic_rotate %7 by %c47_i32 dim 0 : vector<48x32xf32>, i32 -> vector<48x32xf32>
    %c1 = arith.constant 1 : index
    %c0_8 = arith.constant 0 : index
    %c0_9 = arith.constant 0 : index
    %14 = vector.load %arg2[%c1, %c0_8, %c0_9] : memref<5x32x24xf32, #tpu.memory_space<vmem>>, vector<1x32x24xf32>
    %15 = vector.shape_cast %14 : vector<1x32x24xf32> to vector<32x24xf32>
    %cst_10 = arith.constant dense<0.000000e+00> : vector<48x24xf32>
    %16 = tpu.matmul %13, %15, %cst_10 {dimension_numbers = #tpu.dot_dimension_numbers<[1], [0], [0], [1], [0, 0, 1, 1], [], []>} : vector<48x32xf32>, vector<32x24xf32>, vector<48x24xf32> -> vector<48x24xf32>
    %17 = arith.addf %12, %16 : vector<48x24xf32>
    %c46_i32 = arith.constant 46 : i32
    %18 = tpu.dynamic_rotate %7 by %c46_i32 dim 0 : vector<48x32xf32>, i32 -> vector<48x32xf32>
    %c2 = arith.constant 2 : index
    %c0_11 = arith.constant 0 : index
    %c0_12 = arith.constant 0 : index
    %19 = vector.load %arg2[%c2, %c0_11, %c0_12] : memref<5x32x24xf32, #tpu.memory_space<vmem>>, vector<1x32x24xf32>
    %20 = vector.shape_cast %19 : vector<1x32x24xf32> to vector<32x24xf32>
    %cst_13 = arith.constant dense<0.000000e+00> : vector<48x24xf32>
    %21 = tpu.matmul %18, %20, %cst_13 {dimension_numbers = #tpu.dot_dimension_numbers<[1], [0], [0], [1], [0, 0, 1, 1], [], []>} : vector<48x32xf32>, vector<32x24xf32>, vector<48x24xf32> -> vector<48x24xf32>
    %22 = arith.addf %17, %21 : vector<48x24xf32>
    %c45_i32 = arith.constant 45 : i32
    %23 = tpu.dynamic_rotate %7 by %c45_i32 dim 0 : vector<48x32xf32>, i32 -> vector<48x32xf32>
    %c3 = arith.constant 3 : index
    %c0_14 = arith.constant 0 : index
    %c0_15 = arith.constant 0 : index
    %24 = vector.load %arg2[%c3, %c0_14, %c0_15] : memref<5x32x24xf32, #tpu.memory_space<vmem>>, vector<1x32x24xf32>
    %25 = vector.shape_cast %24 : vector<1x32x24xf32> to vector<32x24xf32>
    %cst_16 = arith.constant dense<0.000000e+00> : vector<48x24xf32>
    %26 = tpu.matmul %23, %25, %cst_16 {dimension_numbers = #tpu.dot_dimension_numbers<[1], [0], [0], [1], [0, 0, 1, 1], [], []>} : vector<48x32xf32>, vector<32x24xf32>, vector<48x24xf32> -> vector<48x24xf32>
    %27 = arith.addf %22, %26 : vector<48x24xf32>
    %c44_i32 = arith.constant 44 : i32
    %28 = tpu.dynamic_rotate %7 by %c44_i32 dim 0 : vector<48x32xf32>, i32 -> vector<48x32xf32>
    %c4 = arith.constant 4 : index
    %c0_17 = arith.constant 0 : index
    %c0_18 = arith.constant 0 : index
    %29 = vector.load %arg2[%c4, %c0_17, %c0_18] : memref<5x32x24xf32, #tpu.memory_space<vmem>>, vector<1x32x24xf32>
    %30 = vector.shape_cast %29 : vector<1x32x24xf32> to vector<32x24xf32>
    %cst_19 = arith.constant dense<0.000000e+00> : vector<48x24xf32>
    %31 = tpu.matmul %28, %30, %cst_19 {dimension_numbers = #tpu.dot_dimension_numbers<[1], [0], [0], [1], [0, 0, 1, 1], [], []>} : vector<48x32xf32>, vector<32x24xf32>, vector<48x24xf32> -> vector<48x24xf32>
    %32 = arith.addf %27, %31 : vector<48x24xf32>
    %c0_20 = arith.constant 0 : index
    %c0_21 = arith.constant 0 : index
    %33 = vector.load %arg3[%c0_20, %c0_21] : memref<48x24xf32, #tpu.memory_space<vmem>>, vector<48x24xf32>
    %34 = arith.addf %32, %33 : vector<48x24xf32>
    %35 = vector.shape_cast %34 : vector<48x24xf32> to vector<2x24x24xf32>
    %cst_22 = arith.constant dense<0xFF800000> : vector<2x24xf32>
    %36 = vector.multi_reduction <maximumf>, %35, %cst_22 [1] : vector<2x24x24xf32> to vector<2x24xf32>
    %cst_23 = arith.constant 1.000000e+00 : f32
    %37 = vector.broadcast %cst_23 : f32 to vector<2x24xf32>
    %38 = arith.cmpf ogt, %36, %37 : vector<2x24xf32>
    %39 = arith.extui %38 : vector<2x24xi1> to vector<2x24xi32>
    %40 = arith.sitofp %39 : vector<2x24xi32> to vector<2x24xf32>
    %c0_24 = arith.constant 0 : index
    %c0_25 = arith.constant 0 : index
    %41 = vector.load %arg6[%c0_24, %c0_25] : memref<2x24xf32, #tpu.memory_space<vmem>>, vector<2x24xf32>
    tpu.vector_store %arg6[%c0_24, %c0_25], %40 {strides = array<i32>} : memref<2x24xf32, #tpu.memory_space<vmem>>, vector<2x24xf32>,
    %c0_26 = arith.constant 0 : index
    %c0_27 = arith.constant 0 : index
    %42 = vector.load %arg4[%c0_26, %c0_27] : memref<24x4xf32, #tpu.memory_space<vmem>>, vector<24x4xf32>
    %cst_28 = arith.constant dense<0.000000e+00> : vector<2x4xf32>
    %43 = tpu.matmul %40, %42, %cst_28 {dimension_numbers = #tpu.dot_dimension_numbers<[1], [0], [0], [1], [0, 0, 1, 1], [], []>} : vector<2x24xf32>, vector<24x4xf32>, vector<2x4xf32> -> vector<2x4xf32>
    %c0_29 = arith.constant 0 : index
    %c0_30 = arith.constant 0 : index
    %44 = vector.load %arg5[%c0_29, %c0_30] : memref<1x4xf32, #tpu.memory_space<vmem>>, vector<1x4xf32>
    %45 = vector.broadcast %44 : vector<1x4xf32> to vector<2x4xf32>
    %46 = arith.addf %43, %45 : vector<2x4xf32>
    %c0_31 = arith.constant 0 : index
    %c0_32 = arith.constant 0 : index
    %47 = vector.load %arg8[%c0_31, %c0_32] : memref<2x4xf32, #tpu.memory_space<vmem>>, vector<2x4xf32>
    tpu.vector_store %arg8[%c0_31, %c0_32], %46 {strides = array<i32>} : memref<2x4xf32, #tpu.memory_space<vmem>>, vector<2x4xf32>,
    %cst_33 = arith.constant 1.000000e+00 : f32
    %48 = vector.broadcast %cst_33 : f32 to vector<2x4xf32>
    %49 = arith.cmpf ogt, %46, %48 : vector<2x4xf32>
    %50 = arith.extui %49 : vector<2x4xi1> to vector<2x4xi32>
    %51 = arith.sitofp %50 : vector<2x4xi32> to vector<2x4xf32>
    %c0_34 = arith.constant 0 : index
    %c0_35 = arith.constant 0 : index
    %52 = vector.load %arg7[%c0_34, %c0_35] : memref<2x4xf32, #tpu.memory_space<vmem>>, vector<2x4xf32>
    tpu.vector_store %arg7[%c0_34, %c0_35], %51 {strides = array<i32>} : memref<2x4xf32, #tpu.memory_space<vmem>>, vector<2x4xf32>,
    return
  }
}

</mosaic_0001>

<llo_original>
// kernel: tpu_custom_call.1
$region0: #{tpu_custom_call.1}
  #allocation0 [shape = 'u32[]', space=smem, size = 0x4, offset = 0x4, fixed_abs, tag = 'smem constant byte address 0x4 - core index']
  #allocation1 [shape = 'u32[72,128]{1,0:T(1,128)}', space=vmem, size = 0x9000, scoped, tag = 'internal scratch']
  %s0 = inlined_call_operand.vmem [shape: s32[48,1], index: 0, kind: input, shape index: {}]
  %s1 = inlined_call_operand.vmem [shape: f32[50,32], index: 1, kind: input, shape index: {}]
  %s2 = inlined_call_operand.vmem [shape: f32[5,32,24], index: 2, kind: input, shape index: {}]
  %s3 = inlined_call_operand.vmem [shape: f32[48,24], index: 3, kind: input, shape index: {}]
  %s4 = inlined_call_operand.vmem [shape: f32[24,4], index: 4, kind: input, shape index: {}]
  %s5 = inlined_call_operand.vmem [shape: f32[1,4], index: 5, kind: input, shape index: {}]
  %s6 = inlined_call_operand.hbm [shape: f32[2,24], index: 6, kind: output, shape index: {0}]
  %s7 = inlined_call_operand.hbm [shape: f32[2,4], index: 7, kind: output, shape index: {1}]
  %s8 = inlined_call_operand.hbm [shape: f32[2,4], index: 8, kind: output, shape index: {2}]
  %9 = xla_tuple %s6, %s7, %s8
  %s10 = sld [smem:[#allocation0]]
  $region50: #{tpu_custom_call.1} parent=0
    _
  %s12 = ssub.s32 1, %s10
  %s13 = scalar_select 0, %s12, %s10
  $region1: #{tpu_custom_call.1} parent=0
    #allocation2 [shape = 'u8[1024]{0}', space=vmem, size = 0x400, scoped, tag = 'output window, operand 0, single buffered']
    #allocation3 [shape = 's32[1]{0}', space=sflag, size = 0x4, scoped, tag = 'scoped memory for tpu_custom_call.1']
    #allocation4 [shape = 'u8[1024]{0}', space=vmem, size = 0x400, scoped, tag = 'output window, operand 1, single buffered']
    #allocation5 [shape = 's32[1]{0}', space=sflag, size = 0x4, scoped, tag = 'scoped memory for tpu_custom_call.1']
    #allocation6 [shape = 'u8[1024]{0}', space=vmem, size = 0x400, scoped, tag = 'output window, operand 2, single buffered']
    %14 = vsyncpa [#allocation3], 0
    %15 = vsyncpa [#allocation5], 0
    // Predicated region
    $region2: #{tpu_custom_call.1} parent=1 // pred_check
      _
    $region3: #{tpu_custom_call.1} parent=1 // pred_check_branch
      %17 = sbr.rel (0) target = $region5
    $region4: #{tpu_custom_call.1} parent=1 // pred_region
      _
    $region5: #{tpu_custom_call.1} parent=1 // pred_fallthru
      _
    // Predicated region
    $region6: #{tpu_custom_call.1} parent=1 // pred_check
      _
    $region7: #{tpu_custom_call.1} parent=1 // pred_check_branch
      %19 = sbr.rel (0) target = $region9
    $region8: #{tpu_custom_call.1} parent=1 // pred_region
      _
    $region9: #{tpu_custom_call.1} parent=1 // pred_fallthru
      _
    // Predicated region
    $region10: #{tpu_custom_call.1} parent=1 // pred_check
      _
    $region11: #{tpu_custom_call.1} parent=1 // pred_check_branch
      %21 = sbr.rel (0) target = $region13
    $region12: #{tpu_custom_call.1} parent=1 // pred_region
      _
    $region13: #{tpu_custom_call.1} parent=1 // pred_fallthru
      _
    // Predicated region
    $region14: #{tpu_custom_call.1} parent=1 // pred_check
      _
    $region15: #{tpu_custom_call.1} parent=1 // pred_check_branch
      %23 = sbr.rel (0) target = $region17
    $region16: #{tpu_custom_call.1} parent=1 // pred_region
      _
    $region17: #{tpu_custom_call.1} parent=1 // pred_fallthru
      _
    // Predicated region
    $region18: #{tpu_custom_call.1} parent=1 // pred_check
      _
    $region19: #{tpu_custom_call.1} parent=1 // pred_check_branch
      %25 = sbr.rel (0) target = $region21
    $region20: #{tpu_custom_call.1} parent=1 // pred_region
      _
    $region21: #{tpu_custom_call.1} parent=1 // pred_fallthru
      _
    // Predicated region
    $region22: #{tpu_custom_call.1} parent=1 // pred_check
      _
    $region23: #{tpu_custom_call.1} parent=1 // pred_check_branch
      %27 = sbr.rel (0) target = $region25
    $region24: #{tpu_custom_call.1} parent=1 // pred_region
      _
    $region25: #{tpu_custom_call.1} parent=1 // pred_fallthru
      _
    %v28 = vld [vmem:[%s0] sm:$0xff]
    %v29 = vld [vmem:[%s0 + $0x8] sm:$0xff]
    %v30 = vld [vmem:[%s0 + $0x10] sm:$0xff]
    %v31 = vld [vmem:[%s0 + $0x18] sm:$0xff]
    %v32 = vld [vmem:[%s0 + $0x20] sm:$0xff]
    %v33 = vld [vmem:[%s0 + $0x28] sm:$0xff]
    %v34 = vlaneseq
    %v35 = vand.u32 %v34, 127
    %36 = vset.pattern.permute.xlu0 0
    %37 = vperm.xlu0 %36, %v28
    %v38 = vpop.permute.xlu0 %37
    %39 = vset.pattern.permute.xlu0 0
    %40 = vperm.xlu0 %39, %v29
    %v41 = vpop.permute.xlu0 %40
    %42 = vset.pattern.permute.xlu0 0
    %43 = vperm.xlu0 %42, %v30
    %v44 = vpop.permute.xlu0 %43
    %45 = vset.pattern.permute.xlu0 0
    %46 = vperm.xlu0 %45, %v31
    %v47 = vpop.permute.xlu0 %46
    %48 = vset.pattern.permute.xlu0 0
    %49 = vperm.xlu0 %48, %v32
    %v50 = vpop.permute.xlu0 %49
    %51 = vset.pattern.permute.xlu0 0
    %52 = vperm.xlu0 %51, %v33
    %v53 = vpop.permute.xlu0 %52
    %vm54 = vcmp.eq.s32.totalorder %v38, %v35
    %vm55 = vcmp.eq.s32.totalorder %v41, %v35
    %vm56 = vcmp.eq.s32.totalorder %v44, %v35
    %vm57 = vcmp.eq.s32.totalorder %v47, %v35
    %vm58 = vcmp.eq.s32.totalorder %v50, %v35
    %vm59 = vcmp.eq.s32.totalorder %v53, %v35
    %v60 = vsel %vm54, 1, 0
    %v61 = vsel %vm55, 1, 0
    %v62 = vsel %vm56, 1, 0
    %v63 = vsel %vm57, 1, 0
    %v64 = vsel %vm58, 1, 0
    %v65 = vsel %vm59, 1, 0
    %v66 = vcvt.s32.f32 %v60
    %v67 = vcvt.s32.f32 %v61
    %v68 = vcvt.s32.f32 %v62
    %v69 = vcvt.s32.f32 %v63
    %v70 = vcvt.s32.f32 %v64
    %v71 = vcvt.s32.f32 %v65
    %v72 = vld [vmem:[%s1] sm:$0xff]
    %v73 = vld [vmem:[%s1 + $0x8] sm:$0xff]
    %v74 = vld [vmem:[%s1 + $0x10] sm:$0xff]
    %v75 = vld [vmem:[%s1 + $0x18] sm:$0xff]
    %v76 = vld [vmem:[%s1 + $0x20] sm:$0xff]
    %v77 = vld [vmem:[%s1 + $0x28] sm:$0xff]
    %v78 = vld [vmem:[%s1 + $0x30] sm:$0x3]
    %vm79 = vcmask 408576
    %v81 = vsel %vm79, %v66, 0
    %v84 = vsel %vm79, %v67, 0
    %v87 = vsel %vm79, %v68, 0
    %v90 = vsel %vm79, %v69, 0
    %v93 = vsel %vm79, %v70, 0
    %v96 = vsel %vm79, %v71, 0
    %vm98 = vcmask 1041408
    %v100 = vsel %vm98, %v78, 0
    %102 = vmatpush.msra.mxu0 0.0
    %103 = vmatpush.msra.mxu0 0.0
    %104 = vmatpush.msra.mxu0 0.0
    %105 = vmatpush.msra.mxu0 0.0
    %106 = vmatpush.msra.mxu0 0.0
    %107 = vmatpush.msra.mxu0 0.0
    %108 = vmatpush.msra.mxu0 0.0
    %109 = vmatpush.msra.mxu0 0.0
    %110 = vmatpush.msra.mxu0 0.0
    %111 = vmatpush.msra.mxu0 %v100
    %112 = vmatpush.msra.mxu0 %v77
    %113 = vmatpush.msra.mxu0 %v76
    %114 = vmatpush.msra.mxu0 %v75
    %115 = vmatpush.msra.mxu0 %v74
    %116 = vmatpush.msra.mxu0 %v73
    %117 = vmatpush.msra.mxu0 %v72
    %118 = vmatmul.f32.gmra.mxu0 %v81
    %v119 = vpop.f32.mrf.mxu0
    %v120 = vadd.f32 0.0, %v119
    %121 = vmatmul.f32.gmra.mxu0 %v84
    %v122 = vpop.f32.mrf.mxu0
    %v123 = vadd.f32 0.0, %v122
    %124 = vmatmul.f32.gmra.mxu0 %v87
    %v125 = vpop.f32.mrf.mxu0
    %v126 = vadd.f32 0.0, %v125
    %127 = vmatmul.f32.gmra.mxu0 %v90
    %v128 = vpop.f32.mrf.mxu0
    %v129 = vadd.f32 0.0, %v128
    %130 = vmatmul.f32.gmra.mxu0 %v93
    %v131 = vpop.f32.mrf.mxu0
    %v132 = vadd.f32 0.0, %v131
    %133 = vmatmul.f32.gmra.mxu0 %v96
    %v134 = vpop.f32.mrf.mxu0
    %v135 = vadd.f32 0.0, %v134
    %136 = vdwg.mxu0
    %v137 = vld [vmem:[%s2] sm:$0xff]
    %v138 = vld [vmem:[%s2 + $0x8] sm:$0xff]
    %v139 = vld [vmem:[%s2 + $0x10] sm:$0xff]
    %v140 = vld [vmem:[%s2 + $0x18] sm:$0xff]
    %v141 = vrot.slane %v120, 1
    %v142 = vrot.slane %v123, 1
    %v143 = vrot.slane %v126, 1
    %v144 = vrot.slane %v129, 1
    %v145 = vrot.slane %v132, 1
    %v146 = vrot.slane %v135, 1
    %v147 = vlaneseq
    %v148 = vshrl.u32 %v147, 7
    %vm149 = vcmp.lt.s32.totalorder %v148, 7
    %v150 = vsel %vm149, %v145, %v146
    %v151 = vsel %vm149, %v144, %v145
    %v152 = vsel %vm149, %v143, %v144
    %v153 = vsel %vm149, %v142, %v143
    %v154 = vsel %vm149, %v141, %v142
    %v155 = vsel %vm149, %v146, %v141
    %s156 = scalar_lea.vmem %s2, 32
    %v157 = vld [vmem:[%s156] sm:$0xff]
    %v158 = vld [vmem:[%s156 + $0x8] sm:$0xff]
    %v159 = vld [vmem:[%s156 + $0x10] sm:$0xff]
    %v160 = vld [vmem:[%s156 + $0x18] sm:$0xff]
    %vm161 = vcmask 261120
    %v163 = vsel %vm161, %v154, 0
    %v166 = vsel %vm161, %v153, 0
    %v169 = vsel %vm161, %v152, 0
    %v172 = vsel %vm161, %v151, 0
    %v175 = vsel %vm161, %v150, 0
    %v178 = vsel %vm161, %v155, 0
    %180 = vmatpush.msra.mxu0 0.0
    %181 = vmatpush.msra.mxu0 0.0
    %182 = vmatpush.msra.mxu0 0.0
    %183 = vmatpush.msra.mxu0 0.0
    %184 = vmatpush.msra.mxu0 0.0
    %185 = vmatpush.msra.mxu0 0.0
    %186 = vmatpush.msra.mxu0 0.0
    %187 = vmatpush.msra.mxu0 0.0
    %188 = vmatpush.msra.mxu0 0.0
    %189 = vmatpush.msra.mxu0 0.0
    %190 = vmatpush.msra.mxu0 0.0
    %191 = vmatpush.msra.mxu0 0.0
    %192 = vmatpush.msra.mxu0 %v160
    %193 = vmatpush.msra.mxu0 %v159
    %194 = vmatpush.msra.mxu0 %v158
    %195 = vmatpush.msra.mxu0 %v157
    %196 = vmatmul.f32.gmra.mxu0 %v163
    %v197 = vpop.f32.mrf.mxu0
    %v198 = vadd.f32 0.0, %v197
    %199 = vmatmul.f32.gmra.mxu0 %v166
    %v200 = vpop.f32.mrf.mxu0
    %v201 = vadd.f32 0.0, %v200
    %202 = vmatmul.f32.gmra.mxu0 %v169
    %v203 = vpop.f32.mrf.mxu0
    %v204 = vadd.f32 0.0, %v203
    %205 = vmatmul.f32.gmra.mxu0 %v172
    %v206 = vpop.f32.mrf.mxu0
    %v207 = vadd.f32 0.0, %v206
    %208 = vmatmul.f32.gmra.mxu0 %v175
    %v209 = vpop.f32.mrf.mxu0
    %v210 = vadd.f32 0.0, %v209
    %211 = vmatmul.f32.gmra.mxu0 %v178
    %v212 = vpop.f32.mrf.mxu0
    %v213 = vadd.f32 0.0, %v212
    %214 = vdwg.mxu0
    %v216 = vsel %vm161, %v120, 0
    %v219 = vsel %vm161, %v123, 0
    %v222 = vsel %vm161, %v126, 0
    %v225 = vsel %vm161, %v129, 0
    %v228 = vsel %vm161, %v132, 0
    %v231 = vsel %vm161, %v135, 0
    %233 = vmatpush.msra.mxu0 0.0
    %234 = vmatpush.msra.mxu0 0.0
    %235 = vmatpush.msra.mxu0 0.0
    %236 = vmatpush.msra.mxu0 0.0
    %237 = vmatpush.msra.mxu0 0.0
    %238 = vmatpush.msra.mxu0 0.0
    %239 = vmatpush.msra.mxu0 0.0
    %240 = vmatpush.msra.mxu0 0.0
    %241 = vmatpush.msra.mxu0 0.0
    %242 = vmatpush.msra.mxu0 0.0
    %243 = vmatpush.msra.mxu0 0.0
    %244 = vmatpush.msra.mxu0 0.0
    %245 = vmatpush.msra.mxu0 %v140
    %246 = vmatpush.msra.mxu0 %v139
    %247 = vmatpush.msra.mxu0 %v138
    %248 = vmatpush.msra.mxu0 %v137
    %249 = vmatmul.f32.gmra.mxu0 %v216
    %v250 = vpop.f32.mrf.mxu0
    %v251 = vadd.f32 %v198, %v250
    %252 = vmatmul.f32.gmra.mxu0 %v219
    %v253 = vpop.f32.mrf.mxu0
    %v254 = vadd.f32 %v201, %v253
    %255 = vmatmul.f32.gmra.mxu0 %v222
    %v256 = vpop.f32.mrf.mxu0
    %v257 = vadd.f32 %v204, %v256
    %258 = vmatmul.f32.gmra.mxu0 %v225
    %v259 = vpop.f32.mrf.mxu0
    %v260 = vadd.f32 %v207, %v259
    %261 = vmatmul.f32.gmra.mxu0 %v228
    %v262 = vpop.f32.mrf.mxu0
    %v263 = vadd.f32 %v210, %v262
    %264 = vmatmul.f32.gmra.mxu0 %v231
    %v265 = vpop.f32.mrf.mxu0
    %v266 = vadd.f32 %v213, %v265
    %267 = vdwg.mxu0
    %v268 = vrot.slane %v120, 2
    %v269 = vrot.slane %v123, 2
    %v270 = vrot.slane %v126, 2
    %v271 = vrot.slane %v129, 2
    %v272 = vrot.slane %v132, 2
    %v273 = vrot.slane %v135, 2
    %vm274 = vcmp.lt.s32.totalorder %v148, 6
    %v275 = vsel %vm274, %v272, %v273
    %v276 = vsel %vm274, %v271, %v272
    %v277 = vsel %vm274, %v270, %v271
    %v278 = vsel %vm274, %v269, %v270
    %v279 = vsel %vm274, %v268, %v269
    %v280 = vsel %vm274, %v273, %v268
    %s281 = scalar_lea.vmem %s2, 64
    %v282 = vld [vmem:[%s281] sm:$0xff]
    %v283 = vld [vmem:[%s281 + $0x8] sm:$0xff]
    %v284 = vld [vmem:[%s281 + $0x10] sm:$0xff]
    %v285 = vld [vmem:[%s281 + $0x18] sm:$0xff]
    %v287 = vsel %vm161, %v279, 0
    %v290 = vsel %vm161, %v278, 0
    %v293 = vsel %vm161, %v277, 0
    %v296 = vsel %vm161, %v276, 0
    %v299 = vsel %vm161, %v275, 0
    %v302 = vsel %vm161, %v280, 0
    %304 = vmatpush.msra.mxu0 0.0
    %305 = vmatpush.msra.mxu0 0.0
    %306 = vmatpush.msra.mxu0 0.0
    %307 = vmatpush.msra.mxu0 0.0
    %308 = vmatpush.msra.mxu0 0.0
    %309 = vmatpush.msra.mxu0 0.0
    %310 = vmatpush.msra.mxu0 0.0
    %311 = vmatpush.msra.mxu0 0.0
    %312 = vmatpush.msra.mxu0 0.0
    %313 = vmatpush.msra.mxu0 0.0
    %314 = vmatpush.msra.mxu0 0.0
    %315 = vmatpush.msra.mxu0 0.0
    %316 = vmatpush.msra.mxu0 %v285
    %317 = vmatpush.msra.mxu0 %v284
    %318 = vmatpush.msra.mxu0 %v283
    %319 = vmatpush.msra.mxu0 %v282
    %320 = vmatmul.f32.gmra.mxu0 %v287
    %v321 = vpop.f32.mrf.mxu0
    %v322 = vadd.f32 0.0, %v321
    %323 = vmatmul.f32.gmra.mxu0 %v290
    %v324 = vpop.f32.mrf.mxu0
    %v325 = vadd.f32 0.0, %v324
    %326 = vmatmul.f32.gmra.mxu0 %v293
    %v327 = vpop.f32.mrf.mxu0
    %v328 = vadd.f32 0.0, %v327
    %329 = vmatmul.f32.gmra.mxu0 %v296
    %v330 = vpop.f32.mrf.mxu0
    %v331 = vadd.f32 0.0, %v330
    %332 = vmatmul.f32.gmra.mxu0 %v299
    %v333 = vpop.f32.mrf.mxu0
    %v334 = vadd.f32 0.0, %v333
    %335 = vmatmul.f32.gmra.mxu0 %v302
    %v336 = vpop.f32.mrf.mxu0
    %v337 = vadd.f32 0.0, %v336
    %338 = vdwg.mxu0
    %v339 = vadd.f32 %v251, %v322
    %v340 = vadd.f32 %v254, %v325
    %v341 = vadd.f32 %v257, %v328
    %v342 = vadd.f32 %v260, %v331
    %v343 = vadd.f32 %v263, %v334
    %v344 = vadd.f32 %v266, %v337
    %v345 = vrot.slane %v120, 3
    %v346 = vrot.slane %v123, 3
    %v347 = vrot.slane %v126, 3
    %v348 = vrot.slane %v129, 3
    %v349 = vrot.slane %v132, 3
    %v350 = vrot.slane %v135, 3
    %vm351 = vcmp.lt.s32.totalorder %v148, 5
    %v352 = vsel %vm351, %v349, %v350
    %v353 = vsel %vm351, %v348, %v349
    %v354 = vsel %vm351, %v347, %v348
    %v355 = vsel %vm351, %v346, %v347
    %v356 = vsel %vm351, %v345, %v346
    %v357 = vsel %vm351, %v350, %v345
    %s358 = scalar_lea.vmem %s2, 96
    %v359 = vld [vmem:[%s358] sm:$0xff]
    %v360 = vld [vmem:[%s358 + $0x8] sm:$0xff]
    %v361 = vld [vmem:[%s358 + $0x10] sm:$0xff]
    %v362 = vld [vmem:[%s358 + $0x18] sm:$0xff]
    %v364 = vsel %vm161, %v356, 0
    %v367 = vsel %vm161, %v355, 0
    %v370 = vsel %vm161, %v354, 0
    %v373 = vsel %vm161, %v353, 0
    %v376 = vsel %vm161, %v352, 0
    %v379 = vsel %vm161, %v357, 0
    %381 = vmatpush.msra.mxu0 0.0
    %382 = vmatpush.msra.mxu0 0.0
    %383 = vmatpush.msra.mxu0 0.0
    %384 = vmatpush.msra.mxu0 0.0
    %385 = vmatpush.msra.mxu0 0.0
    %386 = vmatpush.msra.mxu0 0.0
    %387 = vmatpush.msra.mxu0 0.0
    %388 = vmatpush.msra.mxu0 0.0
    %389 = vmatpush.msra.mxu0 0.0
    %390 = vmatpush.msra.mxu0 0.0
    %391 = vmatpush.msra.mxu0 0.0
    %392 = vmatpush.msra.mxu0 0.0
    %393 = vmatpush.msra.mxu0 %v362
    %394 = vmatpush.msra.mxu0 %v361
    %395 = vmatpush.msra.mxu0 %v360
    %396 = vmatpush.msra.mxu0 %v359
    %397 = vmatmul.f32.gmra.mxu0 %v364
    %v398 = vpop.f32.mrf.mxu0
    %v399 = vadd.f32 0.0, %v398
    %400 = vmatmul.f32.gmra.mxu0 %v367
    %v401 = vpop.f32.mrf.mxu0
    %v402 = vadd.f32 0.0, %v401
    %403 = vmatmul.f32.gmra.mxu0 %v370
    %v404 = vpop.f32.mrf.mxu0
    %v405 = vadd.f32 0.0, %v404
    %406 = vmatmul.f32.gmra.mxu0 %v373
    %v407 = vpop.f32.mrf.mxu0
    %v408 = vadd.f32 0.0, %v407
    %409 = vmatmul.f32.gmra.mxu0 %v376
    %v410 = vpop.f32.mrf.mxu0
    %v411 = vadd.f32 0.0, %v410
    %412 = vmatmul.f32.gmra.mxu0 %v379
    %v413 = vpop.f32.mrf.mxu0
    %v414 = vadd.f32 0.0, %v413
    %415 = vdwg.mxu0
    %v416 = vadd.f32 %v339, %v399
    %v417 = vadd.f32 %v340, %v402
    %v418 = vadd.f32 %v341, %v405
    %v419 = vadd.f32 %v342, %v408
    %v420 = vadd.f32 %v343, %v411
    %v421 = vadd.f32 %v344, %v414
    %v422 = vrot.slane %v120, 4
    %v423 = vrot.slane %v123, 4
    %v424 = vrot.slane %v126, 4
    %v425 = vrot.slane %v129, 4
    %v426 = vrot.slane %v132, 4
    %v427 = vrot.slane %v135, 4
    %vm428 = vcmp.lt.s32.totalorder %v148, 4
    %v429 = vsel %vm428, %v426, %v427
    %v430 = vsel %vm428, %v425, %v426
    %v431 = vsel %vm428, %v424, %v425
    %v432 = vsel %vm428, %v423, %v424
    %v433 = vsel %vm428, %v422, %v423
    %v434 = vsel %vm428, %v427, %v422
    %s435 = scalar_lea.vmem %s2, 128
    %v436 = vld [vmem:[%s435] sm:$0xff]
    %v437 = vld [vmem:[%s435 + $0x8] sm:$0xff]
    %v438 = vld [vmem:[%s435 + $0x10] sm:$0xff]
    %v439 = vld [vmem:[%s435 + $0x18] sm:$0xff]
    %v441 = vsel %vm161, %v433, 0
    %v444 = vsel %vm161, %v432, 0
    %v447 = vsel %vm161, %v431, 0
    %v450 = vsel %vm161, %v430, 0
    %v453 = vsel %vm161, %v429, 0
    %v456 = vsel %vm161, %v434, 0
    %458 = vmatpush.msra.mxu0 0.0
    %459 = vmatpush.msra.mxu0 0.0
    %460 = vmatpush.msra.mxu0 0.0
    %461 = vmatpush.msra.mxu0 0.0
    %462 = vmatpush.msra.mxu0 0.0
    %463 = vmatpush.msra.mxu0 0.0
    %464 = vmatpush.msra.mxu0 0.0
    %465 = vmatpush.msra.mxu0 0.0
    %466 = vmatpush.msra.mxu0 0.0
    %467 = vmatpush.msra.mxu0 0.0
    %468 = vmatpush.msra.mxu0 0.0
    %469 = vmatpush.msra.mxu0 0.0
    %470 = vmatpush.msra.mxu0 %v439
    %471 = vmatpush.msra.mxu0 %v438
    %472 = vmatpush.msra.mxu0 %v437
    %473 = vmatpush.msra.mxu0 %v436
    %474 = vmatmul.f32.gmra.mxu0 %v441
    %v475 = vpop.f32.mrf.mxu0
    %v476 = vadd.f32 0.0, %v475
    %477 = vmatmul.f32.gmra.mxu0 %v444
    %v478 = vpop.f32.mrf.mxu0
    %v479 = vadd.f32 0.0, %v478
    %480 = vmatmul.f32.gmra.mxu0 %v447
    %v481 = vpop.f32.mrf.mxu0
    %v482 = vadd.f32 0.0, %v481
    %483 = vmatmul.f32.gmra.mxu0 %v450
    %v484 = vpop.f32.mrf.mxu0
    %v485 = vadd.f32 0.0, %v484
    %486 = vmatmul.f32.gmra.mxu0 %v453
    %v487 = vpop.f32.mrf.mxu0
    %v488 = vadd.f32 0.0, %v487
    %489 = vmatmul.f32.gmra.mxu0 %v456
    %v490 = vpop.f32.mrf.mxu0
    %v491 = vadd.f32 0.0, %v490
    %492 = vdwg.mxu0
    %v493 = vadd.f32 %v416, %v476
    %v494 = vadd.f32 %v417, %v479
    %v495 = vadd.f32 %v418, %v482
    %v496 = vadd.f32 %v419, %v485
    %v497 = vadd.f32 %v420, %v488
    %v498 = vadd.f32 %v421, %v491
    %v499 = vld [vmem:[%s3] sm:$0xff]
    %v500 = vld [vmem:[%s3 + $0x8] sm:$0xff]
    %v501 = vld [vmem:[%s3 + $0x10] sm:$0xff]
    %v502 = vld [vmem:[%s3 + $0x18] sm:$0xff]
    %v503 = vld [vmem:[%s3 + $0x20] sm:$0xff]
    %v504 = vld [vmem:[%s3 + $0x28] sm:$0xff]
    %v505 = vadd.f32 %v493, %v499
    %v506 = vadd.f32 %v494, %v500
    %v507 = vadd.f32 %v495, %v501
    %v508 = vadd.f32 %v496, %v502
    %v509 = vadd.f32 %v497, %v503
    %v510 = vadd.f32 %v498, %v504
    %vm511 = vcmask 195584
    %v512 = vsel %vm511, %v505, -inf
    %v513 = vsel %vm511, %v506, -inf
    %v514 = vsel %vm511, %v507, -inf
    %v515 = vmax.f32 %v512, %v514
    %v516 = vmax.f32 %v515, %v513
    %v517 = vrot.slane %v516, 4
    %v518 = vmax.f32 %v516, %v517
    %v519 = vrot.slane %v518, 2
    %v520 = vmax.f32 %v518, %v519
    %v521 = vrot.slane %v520, 1
    %v522 = vmax.f32 %v520, %v521
    %v523 = vsel %vm511, %v508, -inf
    %v524 = vsel %vm511, %v509, -inf
    %v525 = vsel %vm511, %v510, -inf
    %v526 = vmax.f32 %v523, %v525
    %v527 = vmax.f32 %v526, %v524
    %v528 = vrot.slane %v527, 4
    %v529 = vmax.f32 %v527, %v528
    %v530 = vrot.slane %v529, 2
    %v531 = vmax.f32 %v529, %v530
    %v532 = vrot.slane %v531, 1
    %v533 = vmax.f32 %v531, %v532
    %vm534 = vcmp.gt.f32.partialorder %v522, 1.0
    %vm535 = vcmp.gt.f32.partialorder %v533, 1.0
    %v536 = vsel %vm534, 1, 0
    %v537 = vsel %vm535, 1, 0
    %v538 = vcvt.s32.f32 %v536
    %v539 = vcvt.s32.f32 %v537
    %vm542 = vcmask 1041409
    %v543 = vsel %vm542, %v539, %v538
    %vm545 = vcmask 189440
    %546 = vst.msk [vmem:[#allocation2] sm:$0x3] %vm545, %v543
    %v547 = vld [vmem:[%s4] sm:$0xff]
    %v548 = vld [vmem:[%s4 + $0x8] sm:$0xff]
    %v549 = vld [vmem:[%s4 + $0x10] sm:$0xff]
    %v550 = vld [vmem:[%s5] sm:$0x1]
    %v552 = vperm.slane %v550, 0
    %v554 = vsel %vm511, %v543, 0
    %556 = vmatpush.msra.mxu0 0.0
    %557 = vmatpush.msra.mxu0 0.0
    %558 = vmatpush.msra.mxu0 0.0
    %559 = vmatpush.msra.mxu0 0.0
    %560 = vmatpush.msra.mxu0 0.0
    %561 = vmatpush.msra.mxu0 0.0
    %562 = vmatpush.msra.mxu0 0.0
    %563 = vmatpush.msra.mxu0 0.0
    %564 = vmatpush.msra.mxu0 0.0
    %565 = vmatpush.msra.mxu0 0.0
    %566 = vmatpush.msra.mxu0 0.0
    %567 = vmatpush.msra.mxu0 0.0
    %568 = vmatpush.msra.mxu0 0.0
    %569 = vmatpush.msra.mxu0 %v549
    %570 = vmatpush.msra.mxu0 %v548
    %571 = vmatpush.msra.mxu0 %v547
    %572 = vmatmul.f32.gmra.mxu0 %v554
    %v573 = vpop.f32.mrf.mxu0
    %v574 = vadd.f32 %v552, %v573
    %575 = vdwg.mxu0
    %vm576 = vcmask 25600
    %577 = vst.msk [vmem:[#allocation6] sm:$0x3] %vm576, %v574
    %vm578 = vcmp.gt.f32.partialorder %v574, 1.0
    %v579 = vsel %vm578, 1, 0
    %v580 = vcvt.s32.f32 %v579
    %581 = vst.msk [vmem:[#allocation4] sm:$0x3] %vm576, %v580
    // Predicated region
    $region26: #{tpu_custom_call.1} parent=1 // pred_check
      _
    $region27: #{tpu_custom_call.1} parent=1 // pred_check_branch
      %583 = sbr.rel (0) target = $region29
    $region28: #{tpu_custom_call.1} parent=1 // pred_region
      %585 = vsyncadd [#allocation3], 0
      %s587 = sshll.u32 [#allocation2], 4
      %s588 = int_to_ptr.vmem [resolvable:$true] %s587
      %s589 = sshll.u32 %s6, 4
      %s590 = int_to_ptr.hbm [resolvable:$true] %s589
      %592 = dma.vmem_to_hbm [thread:$0]  %s588, 32, %s590, [#allocation3]
    $region29: #{tpu_custom_call.1} parent=1 // pred_fallthru
      _
    // Predicated region
    $region30: #{tpu_custom_call.1} parent=1 // pred_check
      _
    $region31: #{tpu_custom_call.1} parent=1 // pred_check_branch
      %594 = sbr.rel (0) target = $region33
    $region32: #{tpu_custom_call.1} parent=1 // pred_region
      %596 = vsyncadd [#allocation5], 0
      %s598 = sshll.u32 [#allocation4], 4
      %s599 = int_to_ptr.vmem [resolvable:$true] %s598
      %s600 = sshll.u32 %s7, 4
      %s601 = int_to_ptr.hbm [resolvable:$true] %s600
      %603 = dma.vmem_to_hbm [thread:$0]  %s599, 32, %s601, [#allocation5]
    $region33: #{tpu_custom_call.1} parent=1 // pred_fallthru
      _
    // Predicated region
    $region34: #{tpu_custom_call.1} parent=1 // pred_check
      _
    $region35: #{tpu_custom_call.1} parent=1 // pred_check_branch
      %605 = sbr.rel (0) target = $region37
    $region36: #{tpu_custom_call.1} parent=1 // pred_region
      %607 = vsyncadd [#allocation5], 0
      %s609 = sshll.u32 [#allocation6], 4
      %s610 = int_to_ptr.vmem [resolvable:$true] %s609
      %s611 = sshll.u32 %s8, 4
      %s612 = int_to_ptr.hbm [resolvable:$true] %s611
      %614 = dma.vmem_to_hbm [thread:$0]  %s610, 32, %s612, [#allocation5]
    $region37: #{tpu_custom_call.1} parent=1 // pred_fallthru
      _
    // Predicated region
    $region38: #{tpu_custom_call.1} parent=1 // pred_check
      _
    $region39: #{tpu_custom_call.1} parent=1 // pred_check_branch
      %616 = sbr.rel (0) target = $region41
    $region40: #{tpu_custom_call.1} parent=1 // pred_region
      %618 = dma.done [#allocation3], 32
    $region41: #{tpu_custom_call.1} parent=1 // pred_fallthru
      _
    // Predicated region
    $region42: #{tpu_custom_call.1} parent=1 // pred_check
      _
    $region43: #{tpu_custom_call.1} parent=1 // pred_check_branch
      %620 = sbr.rel (0) target = $region45
    $region44: #{tpu_custom_call.1} parent=1 // pred_region
      %622 = dma.done [#allocation5], 32
    $region45: #{tpu_custom_call.1} parent=1 // pred_fallthru
      _
    // Predicated region
    $region46: #{tpu_custom_call.1} parent=1 // pred_check
      _
    $region47: #{tpu_custom_call.1} parent=1 // pred_check_branch
      %624 = sbr.rel (0) target = $region49
    $region48: #{tpu_custom_call.1} parent=1 // pred_region
      %626 = dma.done [#allocation5], 32
    $region49: #{tpu_custom_call.1} parent=1 // pred_fallthru
      _
    %627 = vsyncpa [#allocation3], 1
    %628 = vsyncpa [#allocation5], 1

</llo_original>
